<compile_context>
chip_gen: v5e
topology: v5e:2x2
jax: 0.10.0
libtpu: 0.0.40
codegen_flags: <defaults>
</compile_context>

<pallas_src>
import functools

import jax
import jax.numpy as jnp
import numpy as np
from jax import lax
from jax.experimental import pallas as pl
from jax.experimental.pallas import tpu as pltpu

_LANES = 128
_PAD_LOGIT = -1.0e4   # after f32 upcast: x + softplus(-x) == 0 exactly, sigmoid(x) == 0 exactly


def _combined_loss_kernel(rows, tile_rows, hw, sub,
                          # scalar prefetch (SMEM)
                          seg_pw_ref, w_ref,
                          # streamed / resident VMEM inputs
                          seg_ref, mask_ref, cls_logits_ref, label_ref, cls_w_ref,
                          # output (SMEM, (3,))
                          out_ref,
                          # vreg-sized VMEM partial accumulators (B, sub, 128)
                          bce_acc, inter_acc, union_acc):
    i = pl.program_id(0)
    n_tiles = pl.num_programs(0)

    @pl.when(i == 0)
    def _init():
        bce_acc[...] = jnp.zeros_like(bce_acc)
        inter_acc[...] = jnp.zeros_like(inter_acc)
        union_acc[...] = jnp.zeros_like(union_acc)

    pw = seg_pw_ref[0]

    def _accumulate(mask_row_tail):
        xs = seg_ref[...].astype(jnp.float32)          # (B, R, 128) in-kernel upcast
        ys = mask_ref[...].astype(jnp.float32)
        if mask_row_tail:
            # Sanitize garbage rows of the partial last block BEFORE exp/log1p.
            row = lax.broadcasted_iota(jnp.int32, xs.shape, 1)
            valid = (i * tile_rows + row) < rows
            xs = jnp.where(valid, xs, _PAD_LOGIT)      # -> bce == 0, pred == 0 on padded rows
            ys = jnp.where(valid, ys, 0.0)
        e = jnp.exp(-jnp.abs(xs))                      # shared by softplus and sigmoid
        sp = jnp.maximum(-xs, 0.0) + jnp.log1p(e)      # stable softplus(-xs)
        # BCEWithLogits(pos_weight=pw): (1-y)*x + (1 + (pw-1)*y)*softplus(-x)
        bce = (1.0 - ys) * xs + (1.0 + (pw - 1.0) * ys) * sp
        r = 1.0 / (1.0 + e)                            # exact divide (1e-5 parity)
        pred = jnp.where(xs >= 0.0, r, e * r)          # sigmoid(xs) from the same e

        b, rr, ll = xs.shape

        def _part(v):                                  # (B, R, 128) -> (B, sub, 128) VALU adds
            return jnp.sum(v.reshape(b, rr // sub, sub, ll), axis=1)

        bce_acc[...] += _part(bce)
        inter_acc[...] += _part(pred * ys)
        union_acc[...] += _part(pred + ys)             # merged pred+mask accumulator

    if rows % tile_rows != 0:                          # trace-time: tail masking off hot path
        @pl.when(i < n_tiles - 1)
        def _full_tiles():
            _accumulate(False)

        @pl.when(i == n_tiles - 1)
        def _tail_tile():
            _accumulate(True)
    else:
        _accumulate(False)

    @pl.when(i == n_tiles - 1)
    def _finalize():
        def _reduce(acc):                              # (B, sub, 128) -> (B, 1)
            s = jnp.sum(acc[...], axis=2)
            return jnp.sum(s, axis=1, keepdims=True)

        bce_sum = _reduce(bce_acc)
        inter = _reduce(inter_acc)
        union = _reduce(union_acc)

        loss_bce = bce_sum * (1.0 / hw)                # mean over the (unpadded) HW
        smooth = 1.0
        loss_dice = 1.0 - (2.0 * inter + smooth) / (union + smooth)
        seg_mean = jnp.mean(loss_bce + loss_dice)

        # classification BCEWithLogits (elementwise weight, reduction='none'), once
        x = cls_logits_ref[...].astype(jnp.float32)
        y = label_ref[...].astype(jnp.float32)
        ec = jnp.exp(-jnp.abs(x))
        spc = jnp.maximum(-x, 0.0) + jnp.log1p(ec)
        cls_elt = ((1.0 - y) * x + spc) * cls_w_ref[...].astype(jnp.float32)
        cls_mean = jnp.mean(cls_elt)

        # loss = (weight.view(-1,1) * stack([cls_loss, seg_loss])).sum(0); its mean equals
        # w0*cls_loss.mean() + w1*seg_loss.mean() under any uniform broadcast of the stack.
        out_ref[0] = w_ref[0] * cls_mean + w_ref[1] * seg_mean
        out_ref[1] = seg_mean
        out_ref[2] = cls_mean


def _round_up(x, m):
    return (x + m - 1) // m * m


def combined_loss(cls_logits, seg_logits, label, mask,
                  cls_weights, seg_pos_weight, weights,
                  *, stream_window_bytes=16 * 1024 * 1024):
    """cls_logits: (B, 1, n_cls), seg_logits: (B, 1, H, W), label: (B, n_cls),
       mask: (B, H, W).  Returns (loss.mean(), seg_loss.mean(), cls_loss.mean())."""
    cls2 = jnp.squeeze(cls_logits, axis=1)                   # (B, n_cls)
    seg = jnp.squeeze(seg_logits, axis=1)                    # (B, H, W), native (narrow) dtype
    B = seg.shape[0]
    n_cls = cls2.shape[1]

    if not jnp.issubdtype(mask.dtype, jnp.floating):
        mask = mask.astype(jnp.bfloat16)                     # keep HBM traffic narrow
    seg_flat = seg.reshape(B, -1)
    mask_flat = mask.reshape(B, -1)
    HW = seg_flat.shape[1]

    # Lane-dense layout: pad HW to a multiple of 128 with values that contribute exactly 0.
    hw_pad = _round_up(HW, _LANES)
    if hw_pad != HW:
        seg_flat = jnp.pad(seg_flat, ((0, 0), (0, hw_pad - HW)), constant_values=_PAD_LOGIT)
        mask_flat = jnp.pad(mask_flat, ((0, 0), (0, hw_pad - HW)), constant_values=0.0)
    rows = hw_pad // _LANES
    seg3 = seg_flat.reshape(B, rows, _LANES)
    mask3 = mask_flat.reshape(B, rows, _LANES)

    # Row-tile selection: biggest block whose double-buffered streaming window fits the budget.
    itembytes = seg3.dtype.itemsize + mask3.dtype.itemsize
    bytes_per_row = B * _LANES * itembytes
    sub_align = 16 if min(seg3.dtype.itemsize, mask3.dtype.itemsize) < 4 else 8
    r_budget = max(sub_align, stream_window_bytes // (2 * bytes_per_row))
    r_budget_aligned = max(sub_align, (r_budget // sub_align) * sub_align)
    if rows <= r_budget and rows % 8 == 0:
        tile_rows, sub = rows, 8                             # single resident, fully packed block
    elif rows < 8:
        tile_rows, sub = rows, 1                             # tiny map: single partial block
    else:
        tile_rows = min(r_budget_aligned, max(8, (rows // sub_align) * sub_align))
        sub = 8
    n_tiles = pl.cdiv(rows, tile_rows)

    block_in_bytes = B * tile_rows * _LANES * itembytes      # seg+mask per pipeline buffer
    vmem_limit = int(min(48 * 1024 * 1024,
                         max(16 * 1024 * 1024, 2 * block_in_bytes + 8 * 1024 * 1024)))

    cls_w2 = cls_weights.reshape(1, n_cls).astype(jnp.float32)    # (1, n_cls) resident
    seg_pw = seg_pos_weight.reshape(-1).astype(jnp.float32)       # (1,)  SMEM prefetch
    w = weights.reshape(-1).astype(jnp.float32)                   # (2,)  SMEM prefetch

    kernel = functools.partial(_combined_loss_kernel, rows, tile_rows, HW, sub)

    grid_spec = pltpu.PrefetchScalarGridSpec(
        num_scalar_prefetch=2,
        grid=(n_tiles,),
        in_specs=[
            pl.BlockSpec((B, tile_rows, _LANES), lambda i, *_: (0, i, 0)),  # seg tile
            pl.BlockSpec((B, tile_rows, _LANES), lambda i, *_: (0, i, 0)),  # mask tile
            pl.BlockSpec((B, n_cls), lambda i, *_: (0, 0)),                 # cls logits (resident)
            pl.BlockSpec((B, n_cls), lambda i, *_: (0, 0)),                 # label (resident)
            pl.BlockSpec((1, n_cls), lambda i, *_: (0, 0)),                 # cls weights (resident)
        ],
        out_specs=pl.BlockSpec(memory_space=pltpu.MemorySpace.SMEM),
        scratch_shapes=[pltpu.VMEM((B, sub, _LANES), jnp.float32)] * 3,
    )

    # TODO(synk): v7x-only 2-TensorCore split of the row scan (leading CORE_PARALLEL axis with
    # per-core partial accumulators, combined in the wrapper).
    out = pl.pallas_call(
        kernel,
        out_shape=jax.ShapeDtypeStruct((3,), jnp.float32),
        grid_spec=grid_spec,
        compiler_params=pltpu.CompilerParams(
            dimension_semantics=("arbitrary",),          # accumulators carry across row tiles
            vmem_limit_bytes=vmem_limit),
    )(seg_pw, w, seg3, mask3, cls2, label, cls_w2)

    return out[0], out[1], out[2]


def _reference(cls_logits, seg_logits, label, mask, cls_w, seg_pw, weights):
    """Pure-JAX reference mirroring the PyTorch CombinedLoss forward."""
    x = jnp.squeeze(cls_logits, 1).astype(jnp.float32)
    y = label.astype(jnp.float32)
    sp = jnp.maximum(-x, 0.0) + jnp.log1p(jnp.exp(-jnp.abs(x)))
    cls_loss = ((1.0 - y) * x + sp) * cls_w[None, :].astype(jnp.float32)

    B = x.shape[0]
    xs = jnp.squeeze(seg_logits, 1).reshape(B, -1).astype(jnp.float32)
    ys = mask.reshape(B, -1).astype(jnp.float32)
    sps = jnp.maximum(-xs, 0.0) + jnp.log1p(jnp.exp(-jnp.abs(xs)))
    pw = seg_pw.astype(jnp.float32)[0]
    bce = (1.0 - ys) * xs + (1.0 + (pw - 1.0) * ys) * sps
    loss_bce = bce.mean(1)
    pred = jax.nn.sigmoid(xs)
    inter = jnp.sum(pred * ys, 1)
    union = pred.sum(1) + ys.sum(1)
    dice = 1.0 - (2.0 * inter + 1.0) / (union + 1.0)
    seg_loss = loss_bce + dice

    wf = weights.astype(jnp.float32)
    # (weight.view(-1,1) * stack([cls_loss, seg_loss])).sum(0).mean()
    #   == w0*cls_loss.mean() + w1*seg_loss.mean() under any uniform broadcast of the stack.
    loss_mean = wf[0] * cls_loss.mean() + wf[1] * seg_loss.mean()
    return loss_mean, seg_loss.mean(), cls_loss.mean()


if __name__ == "__main__":
    B, n_cls, H, W = 2, 2, 16, 16

    key = jax.random.PRNGKey(0)
    k1, k2, k3, k4 = jax.random.split(key, 4)
    cls_logits = jax.random.normal(k1, (B, 1, n_cls), dtype=jnp.float32)
    # typical model output dtype for the seg head: keep it narrow, kernel upcasts on-chip
    seg_logits = jax.random.normal(k2, (B, 1, H, W), dtype=jnp.float32).astype(jnp.bfloat16)
    label = (jax.random.uniform(k3, (B, n_cls)) > 0.5).astype(jnp.float32)
    mask = (jax.random.uniform(k4, (B, H, W)) > 0.5).astype(jnp.bfloat16)

    # deterministic parameters matching the module __init__ defaults
    cls_weights = jnp.ones((n_cls,), dtype=jnp.float32)     # BCE class weights
    seg_pos_weight = jnp.array([1.0], dtype=jnp.float32)    # seg pos_weight
    weights = jnp.ones((2,), dtype=jnp.float32)             # CombinedLoss weights=torch.ones(2)

    loss_m, seg_m, cls_m = combined_loss(
        cls_logits, seg_logits, label, mask, cls_weights, seg_pos_weight, weights)
    jax.block_until_ready((loss_m, seg_m, cls_m))

    ref_loss, ref_seg, ref_cls = _reference(
        cls_logits, seg_logits, label, mask, cls_weights, seg_pos_weight, weights)
    np.testing.assert_allclose(np.asarray(loss_m), np.asarray(ref_loss), rtol=1e-5, atol=1e-5)
    np.testing.assert_allclose(np.asarray(seg_m), np.asarray(ref_seg), rtol=1e-5, atol=1e-5)
    np.testing.assert_allclose(np.asarray(cls_m), np.asarray(ref_cls), rtol=1e-5, atol=1e-5)

    print("KERNEL_OK")
</pallas_src>

<mosaic_0001>
module attributes {stable_mosaic.version = 11 : i64} {
  func.func @_combined_loss_kernel(%arg0: i32, %arg1: memref<1xf32, #tpu.memory_space<smem>>, %arg2: memref<2xf32, #tpu.memory_space<smem>>, %arg3: memref<2x2x128xbf16, #tpu.memory_space<vmem>>, %arg4: memref<2x2x128xbf16, #tpu.memory_space<vmem>>, %arg5: memref<2x2xf32, #tpu.memory_space<vmem>>, %arg6: memref<2x2xf32, #tpu.memory_space<vmem>>, %arg7: memref<1x2xf32, #tpu.memory_space<vmem>>, %arg8: memref<3xf32, #tpu.memory_space<smem>>, %arg9: memref<2x1x128xf32, #tpu.memory_space<vmem>>, %arg10: memref<2x1x128xf32, #tpu.memory_space<vmem>>, %arg11: memref<2x1x128xf32, #tpu.memory_space<vmem>>) attributes {dimension_semantics = [#tpu.dimension_semantics<arbitrary>], iteration_bounds = array<i64: 1>, scalar_prefetch = 2 : i64, scratch_operands = 3 : i64, tpu.core_type = #tpu.core_type<tc>, window_params = [{transform_indices = @transform_0, window_bounds = array<i64: 2, 2, 128>}, {transform_indices = @transform_1, window_bounds = array<i64: 2, 2, 128>}, {pipeline_mode = #tpu.pipeline_mode<synchronous>, transform_indices = @transform_2, window_bounds = array<i64: 2, 2>}, {pipeline_mode = #tpu.pipeline_mode<synchronous>, transform_indices = @transform_3, window_bounds = array<i64: 2, 2>}, {pipeline_mode = #tpu.pipeline_mode<synchronous>, transform_indices = @transform_4, window_bounds = array<i64: 1, 2>}, {transform_indices = @transform_5, window_bounds = array<i64: 3>}]} {
    %c0_i32 = arith.constant 0 : i32
    %0 = arith.cmpi eq, %arg0, %c0_i32 : i32
    %1 = arith.extui %0 : i1 to i32
    %c0_i32_0 = arith.constant 0 : i32
    %2 = arith.cmpi ne, %1, %c0_i32_0 : i32
    scf.if %2 {
      %cst_38 = arith.constant 0.000000e+00 : f32
      %56 = vector.broadcast %cst_38 : f32 to vector<2x1x128xf32>
      %c0_39 = arith.constant 0 : index
      %c0_40 = arith.constant 0 : index
      %c0_41 = arith.constant 0 : index
      %57 = vector.load %arg9[%c0_39, %c0_40, %c0_41] : memref<2x1x128xf32, #tpu.memory_space<vmem>>, vector<2x1x128xf32>
      tpu.vector_store %arg9[%c0_39, %c0_40, %c0_41], %56 {strides = array<i32>} : memref<2x1x128xf32, #tpu.memory_space<vmem>>, vector<2x1x128xf32>,
      %cst_42 = arith.constant 0.000000e+00 : f32
      %58 = vector.broadcast %cst_42 : f32 to vector<2x1x128xf32>
      %c0_43 = arith.constant 0 : index
      %c0_44 = arith.constant 0 : index
      %c0_45 = arith.constant 0 : index
      %59 = vector.load %arg10[%c0_43, %c0_44, %c0_45] : memref<2x1x128xf32, #tpu.memory_space<vmem>>, vector<2x1x128xf32>
      tpu.vector_store %arg10[%c0_43, %c0_44, %c0_45], %58 {strides = array<i32>} : memref<2x1x128xf32, #tpu.memory_space<vmem>>, vector<2x1x128xf32>,
      %cst_46 = arith.constant 0.000000e+00 : f32
      %60 = vector.broadcast %cst_46 : f32 to vector<2x1x128xf32>
      %c0_47 = arith.constant 0 : index
      %c0_48 = arith.constant 0 : index
      %c0_49 = arith.constant 0 : index
      %61 = vector.load %arg11[%c0_47, %c0_48, %c0_49] : memref<2x1x128xf32, #tpu.memory_space<vmem>>, vector<2x1x128xf32>
      tpu.vector_store %arg11[%c0_47, %c0_48, %c0_49], %60 {strides = array<i32>} : memref<2x1x128xf32, #tpu.memory_space<vmem>>, vector<2x1x128xf32>,
    } else {
    }
    %c0 = arith.constant 0 : index
    %3 = memref.load %arg1[%c0] : memref<1xf32, #tpu.memory_space<smem>>
    %c0_1 = arith.constant 0 : index
    %c0_2 = arith.constant 0 : index
    %c0_3 = arith.constant 0 : index
    %4 = vector.load %arg3[%c0_1, %c0_2, %c0_3] : memref<2x2x128xbf16, #tpu.memory_space<vmem>>, vector<2x2x128xbf16>
    %5 = arith.extf %4 : vector<2x2x128xbf16> to vector<2x2x128xf32>
    %c0_4 = arith.constant 0 : index
    %c0_5 = arith.constant 0 : index
    %c0_6 = arith.constant 0 : index
    %6 = vector.load %arg4[%c0_4, %c0_5, %c0_6] : memref<2x2x128xbf16, #tpu.memory_space<vmem>>, vector<2x2x128xbf16>
    %7 = arith.extf %6 : vector<2x2x128xbf16> to vector<2x2x128xf32>
    %8 = math.absf %5 : vector<2x2x128xf32>
    %cst = arith.constant 0.000000e+00 : f32
    %9 = vector.broadcast %cst : f32 to vector<2x2x128xf32>
    %10 = arith.subf %9, %8 : vector<2x2x128xf32>
    %11 = math.exp %10 : vector<2x2x128xf32>
    %cst_7 = arith.constant 0.000000e+00 : f32
    %12 = vector.broadcast %cst_7 : f32 to vector<2x2x128xf32>
    %13 = arith.subf %12, %5 : vector<2x2x128xf32>
    %cst_8 = arith.constant 0.000000e+00 : f32
    %14 = vector.broadcast %cst_8 : f32 to vector<2x2x128xf32>
    %15 = arith.maximumf %13, %14 : vector<2x2x128xf32>
    %16 = math.log1p %11 : vector<2x2x128xf32>
    %17 = arith.addf %15, %16 : vector<2x2x128xf32>
    %cst_9 = arith.constant 1.000000e+00 : f32
    %18 = vector.broadcast %cst_9 : f32 to vector<2x2x128xf32>
    %19 = arith.subf %18, %7 : vector<2x2x128xf32>
    %20 = arith.mulf %19, %5 : vector<2x2x128xf32>
    %cst_10 = arith.constant 1.000000e+00 : f32
    %21 = arith.subf %3, %cst_10 : f32
    %22 = vector.broadcast %21 : f32 to vector<2x2x128xf32>
    %23 = arith.mulf %22, %7 : vector<2x2x128xf32>
    %cst_11 = arith.constant 1.000000e+00 : f32
    %24 = vector.broadcast %cst_11 : f32 to vector<2x2x128xf32>
    %25 = arith.addf %24, %23 : vector<2x2x128xf32>
    %26 = arith.mulf %25, %17 : vector<2x2x128xf32>
    %27 = arith.addf %20, %26 : vector<2x2x128xf32>
    %cst_12 = arith.constant 1.000000e+00 : f32
    %28 = vector.broadcast %cst_12 : f32 to vector<2x2x128xf32>
    %29 = arith.addf %28, %11 : vector<2x2x128xf32>
    %cst_13 = arith.constant 1.000000e+00 : f32
    %30 = vector.broadcast %cst_13 : f32 to vector<2x2x128xf32>
    %31 = arith.divf %30, %29 : vector<2x2x128xf32>
    %cst_14 = arith.constant 0.000000e+00 : f32
    %32 = vector.broadcast %cst_14 : f32 to vector<2x2x128xf32>
    %33 = arith.cmpf oge, %5, %32 : vector<2x2x128xf32>
    %34 = arith.mulf %11, %31 : vector<2x2x128xf32>
    %35 = arith.select %33, %31, %34 : vector<2x2x128xi1>, vector<2x2x128xf32>
    %c0_15 = arith.constant 0 : index
    %c0_16 = arith.constant 0 : index
    %c0_17 = arith.constant 0 : index
    %36 = vector.load %arg9[%c0_15, %c0_16, %c0_17] : memref<2x1x128xf32, #tpu.memory_space<vmem>>, vector<2x1x128xf32>
    %37 = vector.shape_cast %27 : vector<2x2x128xf32> to vector<2x2x1x128xf32>
    %cst_18 = arith.constant dense<0.000000e+00> : vector<2x1x128xf32>
    %38 = vector.multi_reduction <add>, %37, %cst_18 [1] : vector<2x2x1x128xf32> to vector<2x1x128xf32>
    %39 = arith.addf %36, %38 : vector<2x1x128xf32>
    %c0_19 = arith.constant 0 : index
    %c0_20 = arith.constant 0 : index
    %c0_21 = arith.constant 0 : index
    %40 = vector.load %arg9[%c0_19, %c0_20, %c0_21] : memref<2x1x128xf32, #tpu.memory_space<vmem>>, vector<2x1x128xf32>
    tpu.vector_store %arg9[%c0_19, %c0_20, %c0_21], %39 {strides = array<i32>} : memref<2x1x128xf32, #tpu.memory_space<vmem>>, vector<2x1x128xf32>,
    %c0_22 = arith.constant 0 : index
    %c0_23 = arith.constant 0 : index
    %c0_24 = arith.constant 0 : index
    %41 = vector.load %arg10[%c0_22, %c0_23, %c0_24] : memref<2x1x128xf32, #tpu.memory_space<vmem>>, vector<2x1x128xf32>
    %42 = arith.mulf %35, %7 : vector<2x2x128xf32>
    %43 = vector.shape_cast %42 : vector<2x2x128xf32> to vector<2x2x1x128xf32>
    %cst_25 = arith.constant dense<0.000000e+00> : vector<2x1x128xf32>
    %44 = vector.multi_reduction <add>, %43, %cst_25 [1] : vector<2x2x1x128xf32> to vector<2x1x128xf32>
    %45 = arith.addf %41, %44 : vector<2x1x128xf32>
    %c0_26 = arith.constant 0 : index
    %c0_27 = arith.constant 0 : index
    %c0_28 = arith.constant 0 : index
    %46 = vector.load %arg10[%c0_26, %c0_27, %c0_28] : memref<2x1x128xf32, #tpu.memory_space<vmem>>, vector<2x1x128xf32>
    tpu.vector_store %arg10[%c0_26, %c0_27, %c0_28], %45 {strides = array<i32>} : memref<2x1x128xf32, #tpu.memory_space<vmem>>, vector<2x1x128xf32>,
    %c0_29 = arith.constant 0 : index
    %c0_30 = arith.constant 0 : index
    %c0_31 = arith.constant 0 : index
    %47 = vector.load %arg11[%c0_29, %c0_30, %c0_31] : memref<2x1x128xf32, #tpu.memory_space<vmem>>, vector<2x1x128xf32>
    %48 = arith.addf %35, %7 : vector<2x2x128xf32>
    %49 = vector.shape_cast %48 : vector<2x2x128xf32> to vector<2x2x1x128xf32>
    %cst_32 = arith.constant dense<0.000000e+00> : vector<2x1x128xf32>
    %50 = vector.multi_reduction <add>, %49, %cst_32 [1] : vector<2x2x1x128xf32> to vector<2x1x128xf32>
    %51 = arith.addf %47, %50 : vector<2x1x128xf32>
    %c0_33 = arith.constant 0 : index
    %c0_34 = arith.constant 0 : index
    %c0_35 = arith.constant 0 : index
    %52 = vector.load %arg11[%c0_33, %c0_34, %c0_35] : memref<2x1x128xf32, #tpu.memory_space<vmem>>, vector<2x1x128xf32>
    tpu.vector_store %arg11[%c0_33, %c0_34, %c0_35], %51 {strides = array<i32>} : memref<2x1x128xf32, #tpu.memory_space<vmem>>, vector<2x1x128xf32>,
    %c0_i32_36 = arith.constant 0 : i32
    %53 = arith.cmpi eq, %arg0, %c0_i32_36 : i32
    %54 = arith.extui %53 : i1 to i32
    %c0_i32_37 = arith.constant 0 : i32
    %55 = arith.cmpi ne, %54, %c0_i32_37 : i32
    scf.if %55 {
      %c0_38 = arith.constant 0 : index
      %c0_39 = arith.constant 0 : index
      %c0_40 = arith.constant 0 : index
      %56 = vector.load %arg9[%c0_38, %c0_39, %c0_40] : memref<2x1x128xf32, #tpu.memory_space<vmem>>, vector<2x1x128xf32>
      %cst_41 = arith.constant dense<0.000000e+00> : vector<2x1xf32>
      %57 = vector.multi_reduction <add>, %56, %cst_41 [2] : vector<2x1x128xf32> to vector<2x1xf32>
      %cst_42 = arith.constant dense<0.000000e+00> : vector<2xf32>
      %58 = vector.multi_reduction <add>, %57, %cst_42 [1] : vector<2x1xf32> to vector<2xf32>
      %59 = vector.shape_cast %58 : vector<2xf32> to vector<2x1xf32>
      %c0_43 = arith.constant 0 : index
      %c0_44 = arith.constant 0 : index
      %c0_45 = arith.constant 0 : index
      %60 = vector.load %arg10[%c0_43, %c0_44, %c0_45] : memref<2x1x128xf32, #tpu.memory_space<vmem>>, vector<2x1x128xf32>
      %cst_46 = arith.constant dense<0.000000e+00> : vector<2x1xf32>
      %61 = vector.multi_reduction <add>, %60, %cst_46 [2] : vector<2x1x128xf32> to vector<2x1xf32>
      %cst_47 = arith.constant dense<0.000000e+00> : vector<2xf32>
      %62 = vector.multi_reduction <add>, %61, %cst_47 [1] : vector<2x1xf32> to vector<2xf32>
      %63 = vector.shape_cast %62 : vector<2xf32> to vector<2x1xf32>
      %c0_48 = arith.constant 0 : index
      %c0_49 = arith.constant 0 : index
      %c0_50 = arith.constant 0 : index
      %64 = vector.load %arg11[%c0_48, %c0_49, %c0_50] : memref<2x1x128xf32, #tpu.memory_space<vmem>>, vector<2x1x128xf32>
      %cst_51 = arith.constant dense<0.000000e+00> : vector<2x1xf32>
      %65 = vector.multi_reduction <add>, %64, %cst_51 [2] : vector<2x1x128xf32> to vector<2x1xf32>
      %cst_52 = arith.constant dense<0.000000e+00> : vector<2xf32>
      %66 = vector.multi_reduction <add>, %65, %cst_52 [1] : vector<2x1xf32> to vector<2xf32>
      %67 = vector.shape_cast %66 : vector<2xf32> to vector<2x1xf32>
      %cst_53 = arith.constant 3.906250e-03 : f32
      %68 = vector.broadcast %cst_53 : f32 to vector<2x1xf32>
      %69 = arith.mulf %59, %68 : vector<2x1xf32>
      %cst_54 = arith.constant 2.000000e+00 : f32
      %70 = vector.broadcast %cst_54 : f32 to vector<2x1xf32>
      %71 = arith.mulf %70, %63 : vector<2x1xf32>
      %cst_55 = arith.constant 1.000000e+00 : f32
      %72 = vector.broadcast %cst_55 : f32 to vector<2x1xf32>
      %73 = arith.addf %71, %72 : vector<2x1xf32>
      %cst_56 = arith.constant 1.000000e+00 : f32
      %74 = vector.broadcast %cst_56 : f32 to vector<2x1xf32>
      %75 = arith.addf %67, %74 : vector<2x1xf32>
      %76 = arith.divf %73, %75 : vector<2x1xf32>
      %cst_57 = arith.constant 1.000000e+00 : f32
      %77 = vector.broadcast %cst_57 : f32 to vector<2x1xf32>
      %78 = arith.subf %77, %76 : vector<2x1xf32>
      %79 = arith.addf %69, %78 : vector<2x1xf32>
      %80 = vector.shape_cast %79 : vector<2x1xf32> to vector<1x2x1xf32>
      %cst_58 = arith.constant dense<0.000000e+00> : vector<1xf32>
      %81 = vector.multi_reduction <add>, %80, %cst_58 [1, 2] : vector<1x2x1xf32> to vector<1xf32>
      %82 = vector.shape_cast %81 : vector<1xf32> to vector<1x1x1xf32>
      %83 = vector.extract %82[0, 0, 0] : f32 from vector<1x1x1xf32>
      %cst_59 = arith.constant 2.000000e+00 : f32
      %84 = arith.divf %83, %cst_59 : f32
      %c0_60 = arith.constant 0 : index
      %c0_61 = arith.constant 0 : index
      %85 = vector.load %arg5[%c0_60, %c0_61] : memref<2x2xf32, #tpu.memory_space<vmem>>, vector<2x2xf32>
      %c0_62 = arith.constant 0 : index
      %c0_63 = arith.constant 0 : index
      %86 = vector.load %arg6[%c0_62, %c0_63] : memref<2x2xf32, #tpu.memory_space<vmem>>, vector<2x2xf32>
      %87 = math.absf %85 : vector<2x2xf32>
      %cst_64 = arith.constant 0.000000e+00 : f32
      %88 = vector.broadcast %cst_64 : f32 to vector<2x2xf32>
      %89 = arith.subf %88, %87 : vector<2x2xf32>
      %90 = math.exp %89 : vector<2x2xf32>
      %cst_65 = arith.constant 0.000000e+00 : f32
      %91 = vector.broadcast %cst_65 : f32 to vector<2x2xf32>
      %92 = arith.subf %91, %85 : vector<2x2xf32>
      %cst_66 = arith.constant 0.000000e+00 : f32
      %93 = vector.broadcast %cst_66 : f32 to vector<2x2xf32>
      %94 = arith.maximumf %92, %93 : vector<2x2xf32>
      %95 = math.log1p %90 : vector<2x2xf32>
      %96 = arith.addf %94, %95 : vector<2x2xf32>
      %cst_67 = arith.constant 1.000000e+00 : f32
      %97 = vector.broadcast %cst_67 : f32 to vector<2x2xf32>
      %98 = arith.subf %97, %86 : vector<2x2xf32>
      %99 = arith.mulf %98, %85 : vector<2x2xf32>
      %100 = arith.addf %99, %96 : vector<2x2xf32>
      %c0_68 = arith.constant 0 : index
      %c0_69 = arith.constant 0 : index
      %101 = vector.load %arg7[%c0_68, %c0_69] : memref<1x2xf32, #tpu.memory_space<vmem>>, vector<1x2xf32>
      %102 = vector.broadcast %101 : vector<1x2xf32> to vector<2x2xf32>
      %103 = arith.mulf %100, %102 : vector<2x2xf32>
      %104 = vector.shape_cast %103 : vector<2x2xf32> to vector<1x2x2xf32>
      %cst_70 = arith.constant dense<0.000000e+00> : vector<1xf32>
      %105 = vector.multi_reduction <add>, %104, %cst_70 [1, 2] : vector<1x2x2xf32> to vector<1xf32>
      %106 = vector.shape_cast %105 : vector<1xf32> to vector<1x1x1xf32>
      %107 = vector.extract %106[0, 0, 0] : f32 from vector<1x1x1xf32>
      %cst_71 = arith.constant 4.000000e+00 : f32
      %108 = arith.divf %107, %cst_71 : f32
      %c0_72 = arith.constant 0 : index
      %109 = memref.load %arg2[%c0_72] : memref<2xf32, #tpu.memory_space<smem>>
      %110 = arith.mulf %109, %108 : f32
      %c1 = arith.constant 1 : index
      %111 = memref.load %arg2[%c1] : memref<2xf32, #tpu.memory_space<smem>>
      %112 = arith.mulf %111, %84 : f32
      %113 = arith.addf %110, %112 : f32
      %c0_73 = arith.constant 0 : index
      %114 = memref.load %arg8[%c0_73] : memref<3xf32, #tpu.memory_space<smem>>
      memref.store %113, %arg8[%c0_73] : memref<3xf32, #tpu.memory_space<smem>>
      %c1_74 = arith.constant 1 : index
      %115 = memref.load %arg8[%c1_74] : memref<3xf32, #tpu.memory_space<smem>>
      memref.store %84, %arg8[%c1_74] : memref<3xf32, #tpu.memory_space<smem>>
      %c2 = arith.constant 2 : index
      %116 = memref.load %arg8[%c2] : memref<3xf32, #tpu.memory_space<smem>>
      memref.store %108, %arg8[%c2] : memref<3xf32, #tpu.memory_space<smem>>
    } else {
    }
    return
  }
  func.func @transform_0(%arg0: i32, %arg1: memref<1xf32, #tpu.memory_space<smem>>, %arg2: memref<2xf32, #tpu.memory_space<smem>>) -> (i32, i32, i32) {
    %c0_i32 = arith.constant 0 : i32
    %c0_i32_0 = arith.constant 0 : i32
    %c0_i32_1 = arith.constant 0 : i32
    return %c0_i32, %arg0, %c0_i32_0 : i32, i32, i32
  }
  func.func @transform_1(%arg0: i32, %arg1: memref<1xf32, #tpu.memory_space<smem>>, %arg2: memref<2xf32, #tpu.memory_space<smem>>) -> (i32, i32, i32) {
    %c0_i32 = arith.constant 0 : i32
    %c0_i32_0 = arith.constant 0 : i32
    %c0_i32_1 = arith.constant 0 : i32
    return %c0_i32, %arg0, %c0_i32_0 : i32, i32, i32
  }
  func.func @transform_2(%arg0: i32, %arg1: memref<1xf32, #tpu.memory_space<smem>>, %arg2: memref<2xf32, #tpu.memory_space<smem>>) -> (i32, i32) {
    %c0_i32 = arith.constant 0 : i32
    %c0_i32_0 = arith.constant 0 : i32
    %c0_i32_1 = arith.constant 0 : i32
    return %c0_i32, %c0_i32_0 : i32, i32
  }
  func.func @transform_3(%arg0: i32, %arg1: memref<1xf32, #tpu.memory_space<smem>>, %arg2: memref<2xf32, #tpu.memory_space<smem>>) -> (i32, i32) {
    %c0_i32 = arith.constant 0 : i32
    %c0_i32_0 = arith.constant 0 : i32
    %c0_i32_1 = arith.constant 0 : i32
    return %c0_i32, %c0_i32_0 : i32, i32
  }
  func.func @transform_4(%arg0: i32, %arg1: memref<1xf32, #tpu.memory_space<smem>>, %arg2: memref<2xf32, #tpu.memory_space<smem>>) -> (i32, i32) {
    %c0_i32 = arith.constant 0 : i32
    %c0_i32_0 = arith.constant 0 : i32
    %c0_i32_1 = arith.constant 0 : i32
    return %c0_i32, %c0_i32_0 : i32, i32
  }
  func.func @transform_5(%arg0: i32, %arg1: memref<1xf32, #tpu.memory_space<smem>>, %arg2: memref<2xf32, #tpu.memory_space<smem>>) -> i32 {
    %c0_i32 = arith.constant 0 : i32
    %c0_i32_0 = arith.constant 0 : i32
    return %c0_i32 : i32
  }
}

</mosaic_0001>

<llo_original>
// kernel: tpu_custom_call.1
$region0: #{tpu_custom_call.1}
  #allocation0 [shape = 'u32[]', space=smem, size = 0x4, offset = 0x4, fixed_abs, tag = 'smem constant byte address 0x4 - core index']
  #allocation1 [shape = 'u32[72,128]{1,0:T(1,128)}', space=vmem, size = 0x9000, scoped, tag = 'internal scratch']
  #allocation2 [shape = 'f32[2,1,128]{2,1,0:T(1,128)}', space=vmem, size = 0x400, scoped, tag = 'scratch operand']
  #allocation3 [shape = 'f32[2,1,128]{2,1,0:T(1,128)}', space=vmem, size = 0x400, scoped, tag = 'scratch operand']
  #allocation4 [shape = 'f32[2,1,128]{2,1,0:T(1,128)}', space=vmem, size = 0x400, scoped, tag = 'scratch operand']
  #allocation5 [shape = 's32[1]{0}', space=sflag, size = 0x4, scoped, tag = 'scoped memory for tpu_custom_call.1']
  #allocation6 [shape = 'f32[1]{0:T(128)S(6)}', space=smem, size = 0x200, scoped, tag = 'prefetched SMEM operand 0']
  #allocation7 [shape = 'u8[512]{0}', space=smem, size = 0x200, scoped, tag = 'prefetched SMEM operand 1']
  %s0 = inlined_call_operand.<no memory space> [shape: f32[1], index: 0, kind: input, shape index: {}]
  %s1 = inlined_call_operand.hbm [shape: f32[2], index: 1, kind: input, shape index: {}]
  %s2 = inlined_call_operand.vmem [shape: bf16[2,2,128], index: 2, kind: input, shape index: {}]
  %s3 = inlined_call_operand.hbm [shape: bf16[2,2,128], index: 3, kind: input, shape index: {}]
  %s4 = inlined_call_operand.vmem [shape: f32[2,2], index: 4, kind: input, shape index: {}]
  %s5 = inlined_call_operand.hbm [shape: f32[2,2], index: 5, kind: input, shape index: {}]
  %s6 = inlined_call_operand.vmem [shape: f32[1,2], index: 6, kind: input, shape index: {}]
  %s7 = inlined_call_operand.hbm [shape: f32[3], index: 7, kind: output, shape index: {}]
  %s8 = sld [smem:[#allocation0]]
  $region46: #{tpu_custom_call.1} parent=0
    _
  %s10 = ssub.s32 1, %s8
  %s11 = scalar_select 0, %s10, %s8
  %12 = sst [smem:[#allocation6]] %s0
  %s14 = sshll.u32 %s1, 4
  %s15 = int_to_ptr.hbm [resolvable:$true] %s14
  %17 = dma.hbm_to_smem %s15, 16, [#allocation7], [#allocation5]
  %19 = dma.done [#allocation5], 16
  %20 = sfence
  $region1: #{tpu_custom_call.1} parent=0
    #allocation8 [shape = 'u8[1024]{0}', space=vmem, size = 0x400, scoped, tag = 'input window, operand 3, single buffered']
    #allocation9 [shape = 's32[1]{0}', space=sflag, size = 0x4, scoped, tag = 'scoped memory for tpu_custom_call.1']
    #allocation10 [shape = 's32[1]{0}', space=sflag, size = 0x4, scoped, tag = 'scoped memory for tpu_custom_call.1']
    #allocation11 [shape = 'u8[1024]{0}', space=vmem, size = 0x400, scoped, tag = 'input window, operand 5, single buffered']
    #allocation12 [shape = 's32[1]{0}', space=sflag, size = 0x4, scoped, tag = 'scoped memory for tpu_custom_call.1']
    #allocation13 [shape = 'u8[512]{0}', space=smem, size = 0x200, scoped, tag = 'output window, operand 0, single buffered']
    %21 = vsyncpa [#allocation9], 0
    %22 = vsyncpa [#allocation12], 0
    %23 = vsyncpa [#allocation10], 0
    // Predicated region
    $region2: #{tpu_custom_call.1} parent=1 // pred_check
      _
    $region3: #{tpu_custom_call.1} parent=1 // pred_check_branch
      %25 = sbr.rel (0) target = $region5
    $region4: #{tpu_custom_call.1} parent=1 // pred_region
      _
    $region5: #{tpu_custom_call.1} parent=1 // pred_fallthru
      _
    // Predicated region
    $region6: #{tpu_custom_call.1} parent=1 // pred_check
      _
    $region7: #{tpu_custom_call.1} parent=1 // pred_check_branch
      %27 = sbr.rel (0) target = $region9
    $region8: #{tpu_custom_call.1} parent=1 // pred_region
      %29 = vsyncadd [#allocation9], 0
      %s30 = sshll.u32 %s3, 4
      %s31 = int_to_ptr.hbm [resolvable:$true] %s30
      %s32 = sshll.u32 [#allocation8], 4
      %s33 = int_to_ptr.vmem [resolvable:$true] %s32
      %38 = dma.hbm_to_vmem [thread:$0]  %s31, 32, %s33, [#allocation9], 16, 16, 1
    $region9: #{tpu_custom_call.1} parent=1 // pred_fallthru
      _
    // Predicated region
    $region10: #{tpu_custom_call.1} parent=1 // pred_check
      _
    $region11: #{tpu_custom_call.1} parent=1 // pred_check_branch
      %40 = sbr.rel (0) target = $region13
    $region12: #{tpu_custom_call.1} parent=1 // pred_region
      _
    $region13: #{tpu_custom_call.1} parent=1 // pred_fallthru
      _
    // Predicated region
    $region14: #{tpu_custom_call.1} parent=1 // pred_check
      _
    $region15: #{tpu_custom_call.1} parent=1 // pred_check_branch
      %42 = sbr.rel (0) target = $region17
    $region16: #{tpu_custom_call.1} parent=1 // pred_region
      %44 = vsyncadd [#allocation12], 0
      %s46 = sshll.u32 %s5, 4
      %s47 = int_to_ptr.hbm [resolvable:$true] %s46
      %s48 = sshll.u32 [#allocation11], 4
      %s49 = int_to_ptr.vmem [resolvable:$true] %s48
      %51 = dma.hbm_to_vmem [thread:$0]  %s47, 32, %s49, [#allocation12]
    $region17: #{tpu_custom_call.1} parent=1 // pred_fallthru
      _
    // Predicated region
    $region18: #{tpu_custom_call.1} parent=1 // pred_check
      _
    $region19: #{tpu_custom_call.1} parent=1 // pred_check_branch
      %53 = sbr.rel (0) target = $region21
    $region20: #{tpu_custom_call.1} parent=1 // pred_region
      _
    $region21: #{tpu_custom_call.1} parent=1 // pred_fallthru
      _
    // Predicated region
    $region22: #{tpu_custom_call.1} parent=1 // pred_check
      _
    $region23: #{tpu_custom_call.1} parent=1 // pred_check_branch
      %55 = sbr.rel (0) target = $region25
    $region24: #{tpu_custom_call.1} parent=1 // pred_region
      %57 = dma.done [#allocation9], 32
    $region25: #{tpu_custom_call.1} parent=1 // pred_fallthru
      _
    // Predicated region
    $region26: #{tpu_custom_call.1} parent=1 // pred_check
      _
    $region27: #{tpu_custom_call.1} parent=1 // pred_check_branch
      %59 = sbr.rel (0) target = $region29
    $region28: #{tpu_custom_call.1} parent=1 // pred_region
      %61 = dma.done [#allocation12], 32
    $region29: #{tpu_custom_call.1} parent=1 // pred_fallthru
      _
    %p62 = scmp.eq.s32.totalorder 0, 0
    // Predicated region
    $region30: #{tpu_custom_call.1} parent=1 // pred_check
      %p63 = pneg %p62
    $region31: #{tpu_custom_call.1} parent=1 // pred_check_branch
      %65 = sbr.rel (%p63) target = $region33
    $region32: #{tpu_custom_call.1} parent=1 // pred_region
      %66 = vst [vmem:[#allocation2] sm:$0x1] 0.0
      %67 = vst [vmem:[#allocation2 + $0x1] sm:$0x1] 0.0
      %68 = vst [vmem:[#allocation3] sm:$0x1] 0.0
      %69 = vst [vmem:[#allocation3 + $0x1] sm:$0x1] 0.0
      %70 = vst [vmem:[#allocation4] sm:$0x1] 0.0
      %71 = vst [vmem:[#allocation4 + $0x1] sm:$0x1] 0.0
    $region33: #{tpu_custom_call.1} parent=1 // pred_fallthru
      _
    %s72 = sld [smem:[#allocation6]]
    %v73 = vld [vmem:[%s2] sm:$0x1]
    %v74 = vld [vmem:[%s2 + $0x1] sm:$0x1]
    %v75 = vunpack.c.l.bf16 %v73
    %v76 = vunpack.c.l.bf16 %v74
    %v77 = vld [vmem:[#allocation8] sm:$0x1]
    %v78 = vld [vmem:[#allocation8 + $0x1] sm:$0x1]
    %v79 = vunpack.c.l.bf16 %v77
    %v80 = vunpack.c.l.bf16 %v78
    %v81 = vand.u32 2147483647, %v75
    %v82 = vand.u32 2147483647, %v76
    %v83 = vsub.f32 0.0, %v81
    %v84 = vsub.f32 0.0, %v82
    %v85 = vmul.f32 %v83, 1.442695
    %v86 = vpow.pop %v85
    %v87 = vmul.f32 %v84, 1.442695
    %v88 = vpow.pop %v87
    %v89 = vsub.f32 0.0, %v75
    %v90 = vsub.f32 0.0, %v76
    %v91 = vmax.f32 %v89, 0.0
    %v92 = vmax.f32 %v90, 0.0
    %v93 = vadd.f32 %v86, 1.0
    %v94 = vlog2.pop %v93
    %v95 = vmul.f32 %v94, 0.6931472
    %v96 = vmul.f32 -0.5, %v86
    %v97 = vadd.f32 %v96, 1.0
    %v98 = vmul.f32 %v97, %v86
    %v99 = vand.u32 2147483647, %v86
    %vm100 = vcmp.lt.f32.partialorder %v99, 0.0004427343
    %v101 = vsel %vm100, %v98, %v95
    %v102 = vadd.f32 %v88, 1.0
    %v103 = vlog2.pop %v102
    %v104 = vmul.f32 %v103, 0.6931472
    %v105 = vmul.f32 -0.5, %v88
    %v106 = vadd.f32 %v105, 1.0
    %v107 = vmul.f32 %v106, %v88
    %v108 = vand.u32 2147483647, %v88
    %vm109 = vcmp.lt.f32.partialorder %v108, 0.0004427343
    %v110 = vsel %vm109, %v107, %v104
    %v111 = vadd.f32 %v91, %v101
    %v112 = vadd.f32 %v92, %v110
    %v113 = vsub.f32 1.0, %v79
    %v114 = vsub.f32 1.0, %v80
    %v115 = vmul.f32 %v113, %v75
    %v116 = vmul.f32 %v114, %v76
    %s117 = ssub.f32 %s72, 1.0
    %v118 = vstv %s117
    %v119 = vmul.f32 %v118, %v79
    %v120 = vmul.f32 %v118, %v80
    %v121 = vadd.f32 %v119, 1.0
    %v122 = vadd.f32 %v120, 1.0
    %v123 = vmul.f32 %v121, %v111
    %v124 = vmul.f32 %v122, %v112
    %v125 = vadd.f32 %v115, %v123
    %v126 = vadd.f32 %v116, %v124
    %v127 = vadd.f32 %v86, 1.0
    %v128 = vadd.f32 %v88, 1.0
    %v129 = vrcp.pop %v127
    %v130 = vmul.f32 %v127, %v129
    %v131 = vsub.f32 1.0, %v130
    %v132 = vmul.f32 %v129, %v131
    %v133 = vadd.f32 %v129, %v132
    %vm134 = vweird.f32 %v127
    %vm135 = vweird.f32 %v129
    %vm136 = vmor %vm134, %vm135
    %v137 = vsel %vm136, %v129, %v133
    %v138 = vand.u32 2147483647, %v127
    %vm139 = vcmp.eq.f32.partialorder %v138, 8.507059e+37
    %v140 = vand.u32 %v127, 2147483648
    %v141 = vor.u32 1.1754944e-38, %v140
    %v142 = vsel %vm139, %v141, %v137
    %v143 = vmul.f32 1.0, %v142
    %v144 = vrcp.pop %v128
    %v145 = vmul.f32 %v128, %v144
    %v146 = vsub.f32 1.0, %v145
    %v147 = vmul.f32 %v144, %v146
    %v148 = vadd.f32 %v144, %v147
    %vm149 = vweird.f32 %v128
    %vm150 = vweird.f32 %v144
    %vm151 = vmor %vm149, %vm150
    %v152 = vsel %vm151, %v144, %v148
    %v153 = vand.u32 2147483647, %v128
    %vm154 = vcmp.eq.f32.partialorder %v153, 8.507059e+37
    %v155 = vand.u32 %v128, 2147483648
    %v156 = vor.u32 1.1754944e-38, %v155
    %v157 = vsel %vm154, %v156, %v152
    %v158 = vmul.f32 1.0, %v157
    %vm159 = vcmp.ge.f32.partialorder %v75, 0.0
    %vm160 = vcmp.ge.f32.partialorder %v76, 0.0
    %v161 = vmul.f32 %v86, %v143
    %v162 = vmul.f32 %v88, %v158
    %v163 = vsel %vm159, %v143, %v161
    %v164 = vsel %vm160, %v158, %v162
    %v165 = vld [vmem:[#allocation2] sm:$0x1]
    %v166 = vld [vmem:[#allocation2 + $0x1] sm:$0x1]
    %v169 = vrot.slane %v125, 1
    %v170 = vrot.slane %v125, 2
    %v171 = vrot.slane %v125, 3
    %v172 = vrot.slane %v126, 1
    %v173 = vrot.slane %v126, 2
    %v174 = vrot.slane %v126, 3
    %vm175 = vcmask 1040384
    %v176 = vsel %vm175, %v125, %v169
    %vm177 = vcmask 1042434
    %v178 = vsel %vm177, %v170, %v171
    %vm179 = vcmask 1041408
    %v180 = vsel %vm179, %v176, %v178
    %vm181 = vcmask 1041409
    %v182 = vsel %vm181, %v125, %v169
    %vm183 = vcmask 1043459
    %v184 = vsel %vm183, %v170, %v171
    %vm185 = vcmask 1042433
    %v186 = vsel %vm185, %v182, %v184
    %v187 = vrot.slane %v186, 1
    %v188 = vsel %vm175, %v126, %v172
    %v189 = vsel %vm177, %v173, %v174
    %v190 = vsel %vm179, %v188, %v189
    %v191 = vsel %vm181, %v126, %v172
    %v192 = vsel %vm183, %v173, %v174
    %v193 = vsel %vm185, %v191, %v192
    %v194 = vrot.slane %v193, 1
    %v199 = vsel %vm175, %v180, 0.0
    %v200 = vsel %vm175, %v187, 0.0
    %v201 = vadd.f32 %v199, %v200
    %v202 = vsel %vm175, %v190, 0.0
    %v203 = vsel %vm175, %v194, 0.0
    %v204 = vadd.f32 %v202, %v203
    %v205 = vadd.f32 %v165, %v201
    %v206 = vadd.f32 %v166, %v204
    %207 = vst [vmem:[#allocation2] sm:$0x1] %v205
    %208 = vst [vmem:[#allocation2 + $0x1] sm:$0x1] %v206
    %v209 = vld [vmem:[#allocation3] sm:$0x1]
    %v210 = vld [vmem:[#allocation3 + $0x1] sm:$0x1]
    %v211 = vmul.f32 %v163, %v79
    %v212 = vmul.f32 %v164, %v80
    %v215 = vrot.slane %v211, 1
    %v216 = vrot.slane %v211, 2
    %v217 = vrot.slane %v211, 3
    %v218 = vrot.slane %v212, 1
    %v219 = vrot.slane %v212, 2
    %v220 = vrot.slane %v212, 3
    %v221 = vsel %vm175, %v211, %v215
    %v222 = vsel %vm177, %v216, %v217
    %v223 = vsel %vm179, %v221, %v222
    %v224 = vsel %vm181, %v211, %v215
    %v225 = vsel %vm183, %v216, %v217
    %v226 = vsel %vm185, %v224, %v225
    %v227 = vrot.slane %v226, 1
    %v228 = vsel %vm175, %v212, %v218
    %v229 = vsel %vm177, %v219, %v220
    %v230 = vsel %vm179, %v228, %v229
    %v231 = vsel %vm181, %v212, %v218
    %v232 = vsel %vm183, %v219, %v220
    %v233 = vsel %vm185, %v231, %v232
    %v234 = vrot.slane %v233, 1
    %v239 = vsel %vm175, %v223, 0.0
    %v240 = vsel %vm175, %v227, 0.0
    %v241 = vadd.f32 %v239, %v240
    %v242 = vsel %vm175, %v230, 0.0
    %v243 = vsel %vm175, %v234, 0.0
    %v244 = vadd.f32 %v242, %v243
    %v245 = vadd.f32 %v209, %v241
    %v246 = vadd.f32 %v210, %v244
    %247 = vst [vmem:[#allocation3] sm:$0x1] %v245
    %248 = vst [vmem:[#allocation3 + $0x1] sm:$0x1] %v246
    %v249 = vld [vmem:[#allocation4] sm:$0x1]
    %v250 = vld [vmem:[#allocation4 + $0x1] sm:$0x1]
    %v251 = vadd.f32 %v163, %v79
    %v252 = vadd.f32 %v164, %v80
    %v255 = vrot.slane %v251, 1
    %v256 = vrot.slane %v251, 2
    %v257 = vrot.slane %v251, 3
    %v258 = vrot.slane %v252, 1
    %v259 = vrot.slane %v252, 2
    %v260 = vrot.slane %v252, 3
    %v261 = vsel %vm175, %v251, %v255
    %v262 = vsel %vm177, %v256, %v257
    %v263 = vsel %vm179, %v261, %v262
    %v264 = vsel %vm181, %v251, %v255
    %v265 = vsel %vm183, %v256, %v257
    %v266 = vsel %vm185, %v264, %v265
    %v267 = vrot.slane %v266, 1
    %v268 = vsel %vm175, %v252, %v258
    %v269 = vsel %vm177, %v259, %v260
    %v270 = vsel %vm179, %v268, %v269
    %v271 = vsel %vm181, %v252, %v258
    %v272 = vsel %vm183, %v259, %v260
    %v273 = vsel %vm185, %v271, %v272
    %v274 = vrot.slane %v273, 1
    %v279 = vsel %vm175, %v263, 0.0
    %v280 = vsel %vm175, %v267, 0.0
    %v281 = vadd.f32 %v279, %v280
    %v282 = vsel %vm175, %v270, 0.0
    %v283 = vsel %vm175, %v274, 0.0
    %v284 = vadd.f32 %v282, %v283
    %v285 = vadd.f32 %v249, %v281
    %v286 = vadd.f32 %v250, %v284
    %287 = vst [vmem:[#allocation4] sm:$0x1] %v285
    %288 = vst [vmem:[#allocation4 + $0x1] sm:$0x1] %v286
    // Predicated region
    $region34: #{tpu_custom_call.1} parent=1 // pred_check
      %p289 = pneg %p62
    $region35: #{tpu_custom_call.1} parent=1 // pred_check_branch
      %291 = sbr.rel (%p289) target = $region37
    $region36: #{tpu_custom_call.1} parent=1 // pred_region
      %v292 = vld [vmem:[#allocation2] sm:$0x1]
      %v293 = vld [vmem:[#allocation2 + $0x1] sm:$0x1]
      %v294 = vsel %vm175, %v292, 0.0
      %295 = vadd.xlane.f32.xlu0 %v294
      %v296 = vpop.xlane.xlu0 %295
      %v297 = vsel %vm175, %v293, 0.0
      %298 = vadd.xlane.f32.xlu0 %v297
      %v299 = vpop.xlane.xlu0 %298
      %v300 = vadd.f32 %v296, 0.0
      %v301 = vadd.f32 %v299, 0.0
      %v302 = vld [vmem:[#allocation3] sm:$0x1]
      %v303 = vld [vmem:[#allocation3 + $0x1] sm:$0x1]
      %v304 = vsel %vm175, %v302, 0.0
      %305 = vadd.xlane.f32.xlu0 %v304
      %v306 = vpop.xlane.xlu0 %305
      %v307 = vsel %vm175, %v303, 0.0
      %308 = vadd.xlane.f32.xlu0 %v307
      %v309 = vpop.xlane.xlu0 %308
      %v310 = vadd.f32 %v306, 0.0
      %v311 = vadd.f32 %v309, 0.0
      %v312 = vld [vmem:[#allocation4] sm:$0x1]
      %v313 = vld [vmem:[#allocation4 + $0x1] sm:$0x1]
      %v314 = vsel %vm175, %v312, 0.0
      %315 = vadd.xlane.f32.xlu0 %v314
      %v316 = vpop.xlane.xlu0 %315
      %v317 = vsel %vm175, %v313, 0.0
      %318 = vadd.xlane.f32.xlu0 %v317
      %v319 = vpop.xlane.xlu0 %318
      %v320 = vadd.f32 %v316, 0.0
      %v321 = vadd.f32 %v319, 0.0
      %v322 = vmul.f32 %v300, 0.00390625
      %v323 = vmul.f32 %v301, 0.00390625
      %v324 = vmul.f32 %v310, 2.0
      %v325 = vmul.f32 %v311, 2.0
      %v326 = vadd.f32 %v324, 1.0
      %v327 = vadd.f32 %v325, 1.0
      %v328 = vadd.f32 %v320, 1.0
      %v329 = vadd.f32 %v321, 1.0
      %v330 = vrcp.pop %v328
      %v331 = vmul.f32 %v328, %v330
      %v332 = vsub.f32 1.0, %v331
      %v333 = vmul.f32 %v330, %v332
      %v334 = vadd.f32 %v330, %v333
      %vm335 = vweird.f32 %v328
      %vm336 = vweird.f32 %v330
      %vm337 = vmor %vm335, %vm336
      %v338 = vsel %vm337, %v330, %v334
      %v339 = vand.u32 2147483647, %v328
      %vm340 = vcmp.eq.f32.partialorder %v339, 8.507059e+37
      %v341 = vand.u32 %v328, 2147483648
      %v342 = vor.u32 1.1754944e-38, %v341
      %v343 = vsel %vm340, %v342, %v338
      %v344 = vmul.f32 %v326, %v343
      %v345 = vrcp.pop %v329
      %v346 = vmul.f32 %v329, %v345
      %v347 = vsub.f32 1.0, %v346
      %v348 = vmul.f32 %v345, %v347
      %v349 = vadd.f32 %v345, %v348
      %vm350 = vweird.f32 %v329
      %vm351 = vweird.f32 %v345
      %vm352 = vmor %vm350, %vm351
      %v353 = vsel %vm352, %v345, %v349
      %v354 = vand.u32 2147483647, %v329
      %vm355 = vcmp.eq.f32.partialorder %v354, 8.507059e+37
      %v356 = vand.u32 %v329, 2147483648
      %v357 = vor.u32 1.1754944e-38, %v356
      %v358 = vsel %vm355, %v357, %v353
      %v359 = vmul.f32 %v327, %v358
      %v360 = vsub.f32 1.0, %v344
      %v361 = vsub.f32 1.0, %v359
      %v362 = vadd.f32 %v322, %v360
      %v363 = vadd.f32 %v323, %v361
      %v366 = vrot.slane %v363, 7
      %v367 = vsel %vm181, %v366, %v362
      %vm369 = vcmask 1024
      %v370 = vsel %vm369, %v367, 0.0
      %371 = vadd.xlane.f32.xlu0 %v370
      %v372 = vpop.xlane.xlu0 %371
      %v373 = vrot.slane %v372, 4
      %v374 = vadd.f32 %v372, %v373
      %v375 = vrot.slane %v374, 2
      %v376 = vadd.f32 %v374, %v375
      %v377 = vrot.slane %v376, 1
      %v378 = vadd.f32 %v376, %v377
      %s379 = vtos %v378
      %v380 = vrcp.pop 2.0
      %v381 = vmul.f32 2.0, %v380
      %v382 = vsub.f32 1.0, %v381
      %v383 = vmul.f32 %v380, %v382
      %v384 = vadd.f32 %v380, %v383
      %vm385 = vweird.f32 %v380
      %v386 = vsel %vm385, %v380, %v384
      %s387 = vtos %v386
      %s388 = smul.f32 %s379, %s387
      %v389 = vld [vmem:[%s4] sm:$0x3]
      %v390 = vld [vmem:[#allocation11] sm:$0x3]
      %v391 = vand.u32 2147483647, %v389
      %v392 = vsub.f32 0.0, %v391
      %v393 = vmul.f32 %v392, 1.442695
      %v394 = vpow.pop %v393
      %v395 = vsub.f32 0.0, %v389
      %v396 = vmax.f32 %v395, 0.0
      %v397 = vadd.f32 %v394, 1.0
      %v398 = vlog2.pop %v397
      %v399 = vmul.f32 %v398, 0.6931472
      %v400 = vmul.f32 -0.5, %v394
      %v401 = vadd.f32 %v400, 1.0
      %v402 = vmul.f32 %v401, %v394
      %v403 = vand.u32 2147483647, %v394
      %vm404 = vcmp.lt.f32.partialorder %v403, 0.0004427343
      %v405 = vsel %vm404, %v402, %v399
      %v406 = vadd.f32 %v396, %v405
      %v407 = vsub.f32 1.0, %v390
      %v408 = vmul.f32 %v407, %v389
      %v409 = vadd.f32 %v408, %v406
      %v410 = vld [vmem:[%s6] sm:$0x1]
      %v412 = vperm.slane %v410, 0
      %v414 = vmul.f32 %v409, %v412
      %vm415 = vcmask 9216
      %v416 = vsel %vm415, %v414, 0.0
      %417 = vadd.xlane.f32.xlu0 %v416
      %v418 = vpop.xlane.xlu0 %417
      %v419 = vrot.slane %v418, 4
      %v420 = vadd.f32 %v418, %v419
      %v421 = vrot.slane %v420, 2
      %v422 = vadd.f32 %v420, %v421
      %v423 = vrot.slane %v422, 1
      %v424 = vadd.f32 %v422, %v423
      %s425 = vtos %v424
      %v426 = vrcp.pop 4.0
      %v427 = vmul.f32 4.0, %v426
      %v428 = vsub.f32 1.0, %v427
      %v429 = vmul.f32 %v426, %v428
      %v430 = vadd.f32 %v426, %v429
      %vm431 = vweird.f32 %v426
      %v432 = vsel %vm431, %v426, %v430
      %s433 = vtos %v432
      %s434 = smul.f32 %s425, %s433
      %s435 = sld [smem:[#allocation7]]
      %s436 = smul.f32 %s435, %s434
      %s437 = sld [smem:[#allocation7 + $0x1]]
      %s438 = smul.f32 %s437, %s388
      %s439 = sadd.f32 %s436, %s438
      %s440 = scalar_lea.smem [#allocation13], 0
      %441 = sst [smem:[%s440]] %s439
      %s442 = scalar_lea.smem [#allocation13], 1
      %443 = sst [smem:[%s442]] %s388
      %s444 = scalar_lea.smem [#allocation13], 2
      %445 = sst [smem:[%s444]] %s434
    $region37: #{tpu_custom_call.1} parent=1 // pred_fallthru
      _
    // Predicated region
    $region38: #{tpu_custom_call.1} parent=1 // pred_check
      _
    $region39: #{tpu_custom_call.1} parent=1 // pred_check_branch
      %447 = sbr.rel (0) target = $region41
    $region40: #{tpu_custom_call.1} parent=1 // pred_region
      %449 = vsyncadd [#allocation10], 0
      %s451 = sshll.u32 %s7, 4
      %s452 = int_to_ptr.hbm [resolvable:$true] %s451
      %454 = dma.smem_to_hbm [#allocation13], 16, %s452, [#allocation10]
    $region41: #{tpu_custom_call.1} parent=1 // pred_fallthru
      _
    // Predicated region
    $region42: #{tpu_custom_call.1} parent=1 // pred_check
      _
    $region43: #{tpu_custom_call.1} parent=1 // pred_check_branch
      %456 = sbr.rel (0) target = $region45
    $region44: #{tpu_custom_call.1} parent=1 // pred_region
      %458 = dma.done [#allocation10], 16
    $region45: #{tpu_custom_call.1} parent=1 // pred_fallthru
      _
    %459 = sfence
    %460 = vsyncpa [#allocation9], 1
    %461 = vsyncpa [#allocation12], 1
    %462 = vsyncpa [#allocation10], 1

</llo_original>
